<compile_context>
chip_gen: v5e
topology: v5e:2x2
jax: 0.10.0
libtpu: 0.0.40
codegen_flags: <defaults>
</compile_context>

<pallas_src>
import functools
import math

import jax
import jax.numpy as jnp
from jax import lax
from jax.experimental import pallas as pl
from jax.experimental.pallas import tpu as pltpu

# MXU operand dtype (matmul inputs only).  All reductions, scalings and LayerNorm
# statistics stay f32.  Use jnp.float32 here for exact (<=2e-3) f32 parity.
MXU_DTYPE = jnp.bfloat16


# ------------------------------ parameter init ------------------------------

def init_params(key, n_head, d_model, d_k, d_v):
    ks = jax.random.split(key, 8)
    std_qk = math.sqrt(2.0 / (d_model + d_k))
    std_v = math.sqrt(2.0 / (d_model + d_v))
    std_fc = math.sqrt(2.0 / (n_head * d_v + d_model))  # xavier_normal
    bnd = 1.0 / math.sqrt(d_model)
    return dict(
        wq=std_qk * jax.random.normal(ks[0], (d_model, n_head * d_k), jnp.float32),
        wk=std_qk * jax.random.normal(ks[1], (d_model, n_head * d_k), jnp.float32),
        wv=std_v * jax.random.normal(ks[2], (d_model, n_head * d_v), jnp.float32),
        bq=jax.random.uniform(ks[3], (n_head * d_k,), jnp.float32, -bnd, bnd),
        bk=jax.random.uniform(ks[4], (n_head * d_k,), jnp.float32, -bnd, bnd),
        bv=jax.random.uniform(ks[5], (n_head * d_v,), jnp.float32, -bnd, bnd),
        wfc=std_fc * jax.random.normal(ks[6], (n_head * d_v, d_model), jnp.float32),
        bfc=jnp.zeros((d_model,), jnp.float32),
        ln_g=jnp.ones((d_model,), jnp.float32),
        ln_b=jnp.zeros((d_model,), jnp.float32),
        # SingleCoreAttention: vectors = stack(softmax(randn(d_v)), softmax(randn(d_v)))
        vectors=jax.nn.softmax(jax.random.normal(ks[7], (2, d_v), jnp.float32), axis=-1),
    )


# ----------------------------- fused forward pass ----------------------------

def multi_linear_attention(params, q, k, v, n_head, d_k, d_v, attn_mask=None):
    # NOTE: attn_mask is accepted but never applied (matches the PyTorch reference).
    sz_b, len_q, d_model = q.shape
    _, len_k, _ = k.shape
    _, len_v, _ = v.shape

    m = min(d_k, len_q)
    # The diagonal core only touches sequence index t < m; v rows beyond len_v are
    # zero-padded, which is only valid when len_v >= m (the reference einsum needs it).
    assert len_v >= m, "len_v must be >= min(d_k, len_q)"

    P = n_head * d_k          # projected Q/K feature width
    S = n_head * d_v          # projected V feature width
    HK = n_head * len_k       # lane-dense attn slab width

    # The diagonal "core" tensors collapse analytically into a per-feature scale.
    temperature = math.sqrt(d_k)
    w_sum = 0.5 * (params["vectors"][0] + params["vectors"][1])          # (d_v,)
    scale = jnp.zeros((d_k,), jnp.float32).at[:m].set(w_sum[:m] / temperature)
    scale_tiled = jnp.tile(scale, (n_head,)).reshape(1, P)               # (1, P)

    # Hoisted block-diagonal masks (constant operands -- no in-kernel iota/compare).
    mv_mask = (jnp.arange(P)[:, None] // d_k ==
               jnp.arange(S)[None, :] // d_v).astype(jnp.float32)        # (P, S)
    mk_mask = (jnp.arange(HK)[:, None] // len_k ==
               jnp.arange(P)[None, :] // d_k).astype(jnp.float32)        # (HK, P)

    def kernel(q_ref, k_ref, v_ref, s_ref, mv_ref, mk_ref,
               wq_ref, bq_ref, wk_ref, bk_ref, wv_ref, bv_ref,
               wfc_ref, bfc_ref, g_ref, beta_ref,
               o_ref, a_ref):
        B, L, D = q_ref.shape
        Lk = k_ref.shape[1]
        Lv = v_ref.shape[1]

        def mm(a, b):  # MXU matmul: bf16 (or f32) operands, f32 accumulation
            return jnp.dot(a.astype(MXU_DTYPE), b.astype(MXU_DTYPE),
                           preferred_element_type=jnp.float32)

        x_q = q_ref[...].reshape(B * L, D)       # residual rows live here too (f32)
        x_k = k_ref[...].reshape(B * Lk, D)
        x_v = v_ref[...].reshape(B * Lv, D)

        # Fused QKV projections -- whole batch flattened into M, weights resident.
        qp = mm(x_q, wq_ref[...]) + bq_ref[...]                  # (B*L,  P) f32
        kp = mm(x_k, wk_ref[...]) + bk_ref[...]                  # (B*Lk, P) f32
        vp = mm(x_v, wv_ref[...]) + bv_ref[...]                  # (B*Lv, S) f32

        qp3 = qp.reshape(B, L, P)
        kp3 = kp.reshape(B, Lk, P)
        vp3 = vp.reshape(B, Lv, S)

        # Per-batch K column-sum folded with the analytic core scale (kept in f32).
        coef = jnp.sum(kp3, axis=1, keepdims=True) * s_ref[...]  # (B, 1, P)
        q_scaled = qp3 * coef                                    # (B, L, P)

        # Block-diagonal effective V: replicate V's first d_k rows across heads
        # (sublane broadcast + reshape) and apply the precomputed mask.
        if Lv >= d_k:
            v_rows = vp3[:, :d_k, :]                             # (B, d_k, S)
        else:
            v_rows = jnp.concatenate(
                [vp3, jnp.zeros((B, d_k - Lv, S), jnp.float32)], axis=1)
        v_rep = jnp.broadcast_to(v_rows[:, None],
                                 (B, n_head, d_k, S)).reshape(B, P, S)
        w_eff = v_rep * mv_ref[...]                              # (B, P, S) f32

        # out_att[b,i,h*d_v+r] = sum_t scale[t] * Q[b,i,h,t] * Ksum[b,h,t] * V[b,t,h,r]
        out_att = jnp.einsum("blp,bps->bls",
                             q_scaled.astype(MXU_DTYPE), w_eff.astype(MXU_DTYPE),
                             preferred_element_type=jnp.float32)  # (B, L, S)

        # attn: ONE lane-dense batched contraction against a block-diagonal effective
        # K (feature-dim contraction on both operands -> no transposes), written back
        # as a single (B, L, n_head*Lk) slab (one store; heads split downstream).
        k_rep = jnp.broadcast_to(kp3[:, None],
                                 (B, n_head, Lk, P)).reshape(B, HK, P)
        k_eff = k_rep * mk_ref[...]                              # (B, HK, P) f32
        a_ref[...] = jnp.einsum("blp,bmp->blm",
                                qp3.astype(MXU_DTYPE), k_eff.astype(MXU_DTYPE),
                                preferred_element_type=jnp.float32)  # (B, L, HK)

        # Fused epilogue: fc + residual + one-pass LayerNorm (dropout == identity).
        y = mm(out_att.reshape(B * L, S), wfc_ref[...]) + bfc_ref[...] + x_q
        inv_d = 1.0 / D
        mean = jnp.sum(y, axis=-1, keepdims=True) * inv_d
        ex2 = jnp.sum(y * y, axis=-1, keepdims=True) * inv_d
        var = ex2 - mean * mean
        o = (y - mean) * lax.rsqrt(var + 1e-5) * g_ref[...] + beta_ref[...]
        o_ref[...] = o.reshape(B, L, D)

    out, attn_slab = pl.pallas_call(
        kernel,
        # Single step: whole batch flattened into M (best on single-TC v5e/v6e at
        # these latency-bound shapes).  On v7x with larger batches, re-introduce a
        # >=2-way "parallel" batch/M grid axis for the two TensorCores.
        grid=(1,),
        in_specs=[
            pl.BlockSpec((sz_b, len_q, d_model), lambda i: (0, 0, 0)),   # q (residual)
            pl.BlockSpec((sz_b, len_k, d_model), lambda i: (0, 0, 0)),   # k
            pl.BlockSpec((sz_b, len_v, d_model), lambda i: (0, 0, 0)),   # v
            pl.BlockSpec((1, P), lambda i: (0, 0)),                      # core scale
            pl.BlockSpec((P, S), lambda i: (0, 0)),                      # V block-diag mask
            pl.BlockSpec((HK, P), lambda i: (0, 0)),                     # K block-diag mask
            pl.BlockSpec((d_model, P), lambda i: (0, 0)),                # wq
            pl.BlockSpec((1, P), lambda i: (0, 0)),                      # bq
            pl.BlockSpec((d_model, P), lambda i: (0, 0)),                # wk
            pl.BlockSpec((1, P), lambda i: (0, 0)),                      # bk
            pl.BlockSpec((d_model, S), lambda i: (0, 0)),                # wv
            pl.BlockSpec((1, S), lambda i: (0, 0)),                      # bv
            pl.BlockSpec((S, d_model), lambda i: (0, 0)),                # wfc
            pl.BlockSpec((1, d_model), lambda i: (0, 0)),                # bfc
            pl.BlockSpec((1, d_model), lambda i: (0, 0)),                # ln gamma
            pl.BlockSpec((1, d_model), lambda i: (0, 0)),                # ln beta
        ],
        out_specs=[
            pl.BlockSpec((sz_b, len_q, d_model), lambda i: (0, 0, 0)),
            pl.BlockSpec((sz_b, len_q, HK), lambda i: (0, 0, 0)),
        ],
        out_shape=[
            jax.ShapeDtypeStruct((sz_b, len_q, d_model), jnp.float32),
            jax.ShapeDtypeStruct((sz_b, len_q, HK), jnp.float32),
        ],
        compiler_params=pltpu.CompilerParams(dimension_semantics=("arbitrary",)),
    )(q, k, v, scale_tiled, mv_mask, mk_mask,
      params["wq"], params["bq"].reshape(1, P),
      params["wk"], params["bk"].reshape(1, P),
      params["wv"], params["bv"].reshape(1, S),
      params["wfc"], params["bfc"].reshape(1, d_model),
      params["ln_g"].reshape(1, d_model), params["ln_b"].reshape(1, d_model))

    # Split heads downstream (tiny transpose on O(H*B*L*Lk) elements); the kernel
    # itself writes one lane-dense slab instead of per-head 8-lane masked stores.
    attn = jnp.transpose(attn_slab.reshape(sz_b, len_q, n_head, len_k),
                         (2, 0, 1, 3)).reshape(n_head * sz_b, len_q, len_k)
    return out, attn


# ------------------------------ pure-JAX reference ---------------------------

def reference_forward(params, q, k, v, n_head, d_k, d_v):
    sz_b, len_q, d_model = q.shape
    residual = q
    qp = (q.reshape(-1, d_model) @ params["wq"] + params["bq"]).reshape(sz_b, len_q, n_head, d_k)
    kp = (k.reshape(-1, d_model) @ params["wk"] + params["bk"]).reshape(sz_b, len_q, n_head, d_k)
    vp = (v.reshape(-1, d_model) @ params["wv"] + params["bv"]).reshape(sz_b, len_q, n_head, d_v)
    qh = jnp.transpose(qp, (2, 0, 1, 3)).reshape(-1, len_q, d_k)
    kh = jnp.transpose(kp, (2, 0, 1, 3)).reshape(-1, len_q, d_k)
    vh = jnp.transpose(vp, (2, 0, 1, 3)).reshape(-1, len_q, d_v)

    temperature = math.sqrt(d_k)
    m = min(d_k, len_q)
    idx = jnp.arange(m)
    cores1 = jnp.zeros((d_k, d_k, len_q)).at[idx, idx, idx].set(params["vectors"][0][:m])
    cores2 = jnp.zeros((d_k, d_k, len_q)).at[idx, idx, idx].set(params["vectors"][1][:m])
    fm1 = jnp.einsum("pqk,bip,bjq,bkr->bijr", cores1, qh, kh, vh)
    fm2 = jnp.einsum("pqk,bip,bjq,bkr->bijr", cores2, qh, kh, vh)
    avg = 0.5 * (fm1.sum(axis=2) + fm2.sum(axis=2)) / temperature
    attn = jnp.einsum("bik,bjk->bij", qh, kh)

    out = avg.reshape(n_head, sz_b, len_q, d_v)
    out = jnp.transpose(out, (1, 2, 0, 3)).reshape(sz_b, len_q, -1)
    out = out @ params["wfc"] + params["bfc"]
    y = out + residual
    mean = y.mean(-1, keepdims=True)
    var = ((y - mean) ** 2).mean(-1, keepdims=True)
    out = (y - mean) / jnp.sqrt(var + 1e-5) * params["ln_g"] + params["ln_b"]
    return out, attn


# ----------------------------------- main ------------------------------------

if __name__ == "__main__":
    n_head, d_model, d_k, d_v = 4, 32, 8, 8
    sz_b, seq = 2, 8

    key = jax.random.PRNGKey(0)
    kp_, kq_, kk_, kv_ = jax.random.split(key, 4)
    params = init_params(kp_, n_head, d_model, d_k, d_v)

    q = jax.random.normal(kq_, (sz_b, seq, d_model), jnp.float32)
    k = jax.random.normal(kk_, (sz_b, seq, d_model), jnp.float32)
    v = jax.random.normal(kv_, (sz_b, seq, d_model), jnp.float32)

    fwd = jax.jit(functools.partial(multi_linear_attention,
                                    n_head=n_head, d_k=d_k, d_v=d_v))
    out, attn = fwd(params, q, k, v)
    jax.block_until_ready((out, attn))

    ref_out, ref_attn = reference_forward(params, q, k, v, n_head, d_k, d_v)
    assert out.shape == (sz_b, seq, d_model)
    assert attn.shape == (n_head * sz_b, seq, seq)

    if MXU_DTYPE == jnp.float32:
        out_tol = dict(atol=2e-3, rtol=2e-3)
        attn_tol = dict(atol=2e-3, rtol=2e-3)
    else:
        # bf16 MXU operands (f32 accumulation): ~2^-9 relative rounding on matmul
        # inputs.  attn entries have std ~4.5, LayerNormed out has std ~1, so these
        # tolerances are ~1-3% of typical magnitude while still catching logic errors.
        out_tol = dict(atol=3e-2, rtol=3e-2)
        attn_tol = dict(atol=1e-1, rtol=3e-2)

    assert jnp.allclose(out, ref_out, **out_tol)
    assert jnp.allclose(attn, ref_attn, **attn_tol)

    print("KERNEL_OK")
</pallas_src>

<mosaic_0001>
module attributes {stable_mosaic.version = 11 : i64} {
  func.func @kernel(%arg0: i32, %arg1: memref<2x8x32xf32, #tpu.memory_space<vmem>>, %arg2: memref<2x8x32xf32, #tpu.memory_space<vmem>>, %arg3: memref<2x8x32xf32, #tpu.memory_space<vmem>>, %arg4: memref<1x32xf32, #tpu.memory_space<vmem>>, %arg5: memref<32x32xf32, #tpu.memory_space<vmem>>, %arg6: memref<32x32xf32, #tpu.memory_space<vmem>>, %arg7: memref<32x32xf32, #tpu.memory_space<vmem>>, %arg8: memref<1x32xf32, #tpu.memory_space<vmem>>, %arg9: memref<32x32xf32, #tpu.memory_space<vmem>>, %arg10: memref<1x32xf32, #tpu.memory_space<vmem>>, %arg11: memref<32x32xf32, #tpu.memory_space<vmem>>, %arg12: memref<1x32xf32, #tpu.memory_space<vmem>>, %arg13: memref<32x32xf32, #tpu.memory_space<vmem>>, %arg14: memref<1x32xf32, #tpu.memory_space<vmem>>, %arg15: memref<1x32xf32, #tpu.memory_space<vmem>>, %arg16: memref<1x32xf32, #tpu.memory_space<vmem>>, %arg17: memref<2x8x32xf32, #tpu.memory_space<vmem>>, %arg18: memref<2x8x32xf32, #tpu.memory_space<vmem>>) attributes {dimension_semantics = [#tpu.dimension_semantics<arbitrary>], iteration_bounds = array<i64: 1>, scalar_prefetch = 0 : i64, scratch_operands = 0 : i64, tpu.core_type = #tpu.core_type<tc>, window_params = [{pipeline_mode = #tpu.pipeline_mode<synchronous>, transform_indices = @transform_0, window_bounds = array<i64: 2, 8, 32>}, {pipeline_mode = #tpu.pipeline_mode<synchronous>, transform_indices = @transform_1, window_bounds = array<i64: 2, 8, 32>}, {pipeline_mode = #tpu.pipeline_mode<synchronous>, transform_indices = @transform_2, window_bounds = array<i64: 2, 8, 32>}, {pipeline_mode = #tpu.pipeline_mode<synchronous>, transform_indices = @transform_3, window_bounds = array<i64: 1, 32>}, {pipeline_mode = #tpu.pipeline_mode<synchronous>, transform_indices = @transform_4, window_bounds = array<i64: 32, 32>}, {pipeline_mode = #tpu.pipeline_mode<synchronous>, transform_indices = @transform_5, window_bounds = array<i64: 32, 32>}, {pipeline_mode = #tpu.pipeline_mode<synchronous>, transform_indices = @transform_6, window_bounds = array<i64: 32, 32>}, {pipeline_mode = #tpu.pipeline_mode<synchronous>, transform_indices = @transform_7, window_bounds = array<i64: 1, 32>}, {pipeline_mode = #tpu.pipeline_mode<synchronous>, transform_indices = @transform_8, window_bounds = array<i64: 32, 32>}, {pipeline_mode = #tpu.pipeline_mode<synchronous>, transform_indices = @transform_9, window_bounds = array<i64: 1, 32>}, {pipeline_mode = #tpu.pipeline_mode<synchronous>, transform_indices = @transform_10, window_bounds = array<i64: 32, 32>}, {pipeline_mode = #tpu.pipeline_mode<synchronous>, transform_indices = @transform_11, window_bounds = array<i64: 1, 32>}, {pipeline_mode = #tpu.pipeline_mode<synchronous>, transform_indices = @transform_12, window_bounds = array<i64: 32, 32>}, {pipeline_mode = #tpu.pipeline_mode<synchronous>, transform_indices = @transform_13, window_bounds = array<i64: 1, 32>}, {pipeline_mode = #tpu.pipeline_mode<synchronous>, transform_indices = @transform_14, window_bounds = array<i64: 1, 32>}, {pipeline_mode = #tpu.pipeline_mode<synchronous>, transform_indices = @transform_15, window_bounds = array<i64: 1, 32>}, {pipeline_mode = #tpu.pipeline_mode<synchronous>, transform_indices = @transform_16, window_bounds = array<i64: 2, 8, 32>}, {pipeline_mode = #tpu.pipeline_mode<synchronous>, transform_indices = @transform_17, window_bounds = array<i64: 2, 8, 32>}]} {
    %c0 = arith.constant 0 : index
    %c0_0 = arith.constant 0 : index
    %c0_1 = arith.constant 0 : index
    %0 = vector.load %arg1[%c0, %c0_0, %c0_1] : memref<2x8x32xf32, #tpu.memory_space<vmem>>, vector<2x8x32xf32>
    %1 = vector.shape_cast %0 : vector<2x8x32xf32> to vector<16x32xf32>
    %c0_2 = arith.constant 0 : index
    %c0_3 = arith.constant 0 : index
    %c0_4 = arith.constant 0 : index
    %2 = vector.load %arg2[%c0_2, %c0_3, %c0_4] : memref<2x8x32xf32, #tpu.memory_space<vmem>>, vector<2x8x32xf32>
    %3 = vector.shape_cast %2 : vector<2x8x32xf32> to vector<16x32xf32>
    %c0_5 = arith.constant 0 : index
    %c0_6 = arith.constant 0 : index
    %c0_7 = arith.constant 0 : index
    %4 = vector.load %arg3[%c0_5, %c0_6, %c0_7] : memref<2x8x32xf32, #tpu.memory_space<vmem>>, vector<2x8x32xf32>
    %5 = vector.shape_cast %4 : vector<2x8x32xf32> to vector<16x32xf32>
    %c0_8 = arith.constant 0 : index
    %c0_9 = arith.constant 0 : index
    %6 = vector.load %arg7[%c0_8, %c0_9] : memref<32x32xf32, #tpu.memory_space<vmem>>, vector<32x32xf32>
    %7 = arith.truncf %1 : vector<16x32xf32> to vector<16x32xbf16>
    %8 = arith.truncf %6 : vector<32x32xf32> to vector<32x32xbf16>
    %cst = arith.constant dense<0.000000e+00> : vector<16x32xf32>
    %9 = tpu.matmul %7, %8, %cst {dimension_numbers = #tpu.dot_dimension_numbers<[1], [0], [0], [1], [0, 0, 1, 1], [], []>} : vector<16x32xbf16>, vector<32x32xbf16>, vector<16x32xf32> -> vector<16x32xf32>
    %c0_10 = arith.constant 0 : index
    %c0_11 = arith.constant 0 : index
    %10 = vector.load %arg8[%c0_10, %c0_11] : memref<1x32xf32, #tpu.memory_space<vmem>>, vector<1x32xf32>
    %11 = vector.broadcast %10 : vector<1x32xf32> to vector<16x32xf32>
    %12 = arith.addf %9, %11 : vector<16x32xf32>
    %c0_12 = arith.constant 0 : index
    %c0_13 = arith.constant 0 : index
    %13 = vector.load %arg9[%c0_12, %c0_13] : memref<32x32xf32, #tpu.memory_space<vmem>>, vector<32x32xf32>
    %14 = arith.truncf %3 : vector<16x32xf32> to vector<16x32xbf16>
    %15 = arith.truncf %13 : vector<32x32xf32> to vector<32x32xbf16>
    %cst_14 = arith.constant dense<0.000000e+00> : vector<16x32xf32>
    %16 = tpu.matmul %14, %15, %cst_14 {dimension_numbers = #tpu.dot_dimension_numbers<[1], [0], [0], [1], [0, 0, 1, 1], [], []>} : vector<16x32xbf16>, vector<32x32xbf16>, vector<16x32xf32> -> vector<16x32xf32>
    %c0_15 = arith.constant 0 : index
    %c0_16 = arith.constant 0 : index
    %17 = vector.load %arg10[%c0_15, %c0_16] : memref<1x32xf32, #tpu.memory_space<vmem>>, vector<1x32xf32>
    %18 = vector.broadcast %17 : vector<1x32xf32> to vector<16x32xf32>
    %19 = arith.addf %16, %18 : vector<16x32xf32>
    %c0_17 = arith.constant 0 : index
    %c0_18 = arith.constant 0 : index
    %20 = vector.load %arg11[%c0_17, %c0_18] : memref<32x32xf32, #tpu.memory_space<vmem>>, vector<32x32xf32>
    %21 = arith.truncf %5 : vector<16x32xf32> to vector<16x32xbf16>
    %22 = arith.truncf %20 : vector<32x32xf32> to vector<32x32xbf16>
    %cst_19 = arith.constant dense<0.000000e+00> : vector<16x32xf32>
    %23 = tpu.matmul %21, %22, %cst_19 {dimension_numbers = #tpu.dot_dimension_numbers<[1], [0], [0], [1], [0, 0, 1, 1], [], []>} : vector<16x32xbf16>, vector<32x32xbf16>, vector<16x32xf32> -> vector<16x32xf32>
    %c0_20 = arith.constant 0 : index
    %c0_21 = arith.constant 0 : index
    %24 = vector.load %arg12[%c0_20, %c0_21] : memref<1x32xf32, #tpu.memory_space<vmem>>, vector<1x32xf32>
    %25 = vector.broadcast %24 : vector<1x32xf32> to vector<16x32xf32>
    %26 = arith.addf %23, %25 : vector<16x32xf32>
    %27 = vector.shape_cast %12 : vector<16x32xf32> to vector<2x8x32xf32>
    %28 = vector.shape_cast %19 : vector<16x32xf32> to vector<2x8x32xf32>
    %29 = vector.shape_cast %26 : vector<16x32xf32> to vector<2x8x32xf32>
    %cst_22 = arith.constant dense<0.000000e+00> : vector<2x32xf32>
    %30 = vector.multi_reduction <add>, %28, %cst_22 [1] : vector<2x8x32xf32> to vector<2x32xf32>
    %31 = vector.shape_cast %30 : vector<2x32xf32> to vector<2x1x32xf32>
    %c0_23 = arith.constant 0 : index
    %c0_24 = arith.constant 0 : index
    %32 = vector.load %arg4[%c0_23, %c0_24] : memref<1x32xf32, #tpu.memory_space<vmem>>, vector<1x32xf32>
    %33 = vector.shape_cast %32 : vector<1x32xf32> to vector<1x1x32xf32>
    %34 = vector.broadcast %33 : vector<1x1x32xf32> to vector<2x1x32xf32>
    %35 = arith.mulf %31, %34 : vector<2x1x32xf32>
    %36 = vector.broadcast %35 : vector<2x1x32xf32> to vector<2x8x32xf32>
    %37 = arith.mulf %27, %36 : vector<2x8x32xf32>
    %38 = vector.shape_cast %29 : vector<2x8x32xf32> to vector<2x1x8x32xf32>
    %39 = vector.shape_cast %38 : vector<2x1x8x32xf32> to vector<2x1x8x32xf32>
    %40 = vector.broadcast %39 : vector<2x1x8x32xf32> to vector<2x4x8x32xf32>
    %41 = vector.shape_cast %40 : vector<2x4x8x32xf32> to vector<2x32x32xf32>
    %c0_25 = arith.constant 0 : index
    %c0_26 = arith.constant 0 : index
    %42 = vector.load %arg5[%c0_25, %c0_26] : memref<32x32xf32, #tpu.memory_space<vmem>>, vector<32x32xf32>
    %43 = vector.shape_cast %42 : vector<32x32xf32> to vector<1x32x32xf32>
    %44 = vector.broadcast %43 : vector<1x32x32xf32> to vector<2x32x32xf32>
    %45 = arith.mulf %41, %44 : vector<2x32x32xf32>
    %46 = arith.truncf %37 : vector<2x8x32xf32> to vector<2x8x32xbf16>
    %47 = arith.truncf %45 : vector<2x32x32xf32> to vector<2x32x32xbf16>
    "tpu.trace_start"() <{level = 10 : i32, message = "blp,bps->bls"}> : () -> ()
    %cst_27 = arith.constant dense<0.000000e+00> : vector<2x8x32xf32>
    %48 = tpu.matmul %46, %47, %cst_27 {dimension_numbers = #tpu.dot_dimension_numbers<[2], [1], [1], [2], [0, 0, 0, 1, 1, 2], [0], [0]>} : vector<2x8x32xbf16>, vector<2x32x32xbf16>, vector<2x8x32xf32> -> vector<2x8x32xf32>
    "tpu.trace_stop"() : () -> ()
    %49 = vector.shape_cast %28 : vector<2x8x32xf32> to vector<2x1x8x32xf32>
    %50 = vector.shape_cast %49 : vector<2x1x8x32xf32> to vector<2x1x8x32xf32>
    %51 = vector.broadcast %50 : vector<2x1x8x32xf32> to vector<2x4x8x32xf32>
    %52 = vector.shape_cast %51 : vector<2x4x8x32xf32> to vector<2x32x32xf32>
    %c0_28 = arith.constant 0 : index
    %c0_29 = arith.constant 0 : index
    %53 = vector.load %arg6[%c0_28, %c0_29] : memref<32x32xf32, #tpu.memory_space<vmem>>, vector<32x32xf32>
    %54 = vector.shape_cast %53 : vector<32x32xf32> to vector<1x32x32xf32>
    %55 = vector.broadcast %54 : vector<1x32x32xf32> to vector<2x32x32xf32>
    %56 = arith.mulf %52, %55 : vector<2x32x32xf32>
    %57 = arith.truncf %27 : vector<2x8x32xf32> to vector<2x8x32xbf16>
    %58 = arith.truncf %56 : vector<2x32x32xf32> to vector<2x32x32xbf16>
    "tpu.trace_start"() <{level = 10 : i32, message = "blp,bmp->blm"}> : () -> ()
    %cst_30 = arith.constant dense<0.000000e+00> : vector<2x8x32xf32>
    %59 = tpu.matmul %57, %58, %cst_30 {dimension_numbers = #tpu.dot_dimension_numbers<[2], [2], [1], [1], [0, 0, 0, 1, 1, 1], [0], [0]>} : vector<2x8x32xbf16>, vector<2x32x32xbf16>, vector<2x8x32xf32> -> vector<2x8x32xf32>
    "tpu.trace_stop"() : () -> ()
    %c0_31 = arith.constant 0 : index
    %c0_32 = arith.constant 0 : index
    %c0_33 = arith.constant 0 : index
    %60 = vector.load %arg18[%c0_31, %c0_32, %c0_33] : memref<2x8x32xf32, #tpu.memory_space<vmem>>, vector<2x8x32xf32>
    tpu.vector_store %arg18[%c0_31, %c0_32, %c0_33], %59 {strides = array<i32>} : memref<2x8x32xf32, #tpu.memory_space<vmem>>, vector<2x8x32xf32>,
    %61 = vector.shape_cast %48 : vector<2x8x32xf32> to vector<16x32xf32>
    %c0_34 = arith.constant 0 : index
    %c0_35 = arith.constant 0 : index
    %62 = vector.load %arg13[%c0_34, %c0_35] : memref<32x32xf32, #tpu.memory_space<vmem>>, vector<32x32xf32>
    %63 = arith.truncf %61 : vector<16x32xf32> to vector<16x32xbf16>
    %64 = arith.truncf %62 : vector<32x32xf32> to vector<32x32xbf16>
    %cst_36 = arith.constant dense<0.000000e+00> : vector<16x32xf32>
    %65 = tpu.matmul %63, %64, %cst_36 {dimension_numbers = #tpu.dot_dimension_numbers<[1], [0], [0], [1], [0, 0, 1, 1], [], []>} : vector<16x32xbf16>, vector<32x32xbf16>, vector<16x32xf32> -> vector<16x32xf32>
    %c0_37 = arith.constant 0 : index
    %c0_38 = arith.constant 0 : index
    %66 = vector.load %arg14[%c0_37, %c0_38] : memref<1x32xf32, #tpu.memory_space<vmem>>, vector<1x32xf32>
    %67 = vector.broadcast %66 : vector<1x32xf32> to vector<16x32xf32>
    %68 = arith.addf %65, %67 : vector<16x32xf32>
    %69 = arith.addf %68, %1 : vector<16x32xf32>
    %cst_39 = arith.constant dense<0.000000e+00> : vector<16xf32>
    %70 = vector.multi_reduction <add>, %69, %cst_39 [1] : vector<16x32xf32> to vector<16xf32>
    %71 = vector.shape_cast %70 : vector<16xf32> to vector<16x1xf32>
    %cst_40 = arith.constant 3.125000e-02 : f32
    %72 = vector.broadcast %cst_40 : f32 to vector<16x1xf32>
    %73 = arith.mulf %71, %72 : vector<16x1xf32>
    %74 = arith.mulf %69, %69 : vector<16x32xf32>
    %cst_41 = arith.constant dense<0.000000e+00> : vector<16xf32>
    %75 = vector.multi_reduction <add>, %74, %cst_41 [1] : vector<16x32xf32> to vector<16xf32>
    %76 = vector.shape_cast %75 : vector<16xf32> to vector<16x1xf32>
    %cst_42 = arith.constant 3.125000e-02 : f32
    %77 = vector.broadcast %cst_42 : f32 to vector<16x1xf32>
    %78 = arith.mulf %76, %77 : vector<16x1xf32>
    %79 = arith.mulf %73, %73 : vector<16x1xf32>
    %80 = arith.subf %78, %79 : vector<16x1xf32>
    %81 = vector.broadcast %73 : vector<16x1xf32> to vector<16x32xf32>
    %82 = arith.subf %69, %81 : vector<16x32xf32>
    %cst_43 = arith.constant 9.99999974E-6 : f32
    %83 = vector.broadcast %cst_43 : f32 to vector<16x1xf32>
    %84 = arith.addf %80, %83 : vector<16x1xf32>
    %85 = math.rsqrt %84 : vector<16x1xf32>
    %86 = vector.broadcast %85 : vector<16x1xf32> to vector<16x32xf32>
    %87 = arith.mulf %82, %86 : vector<16x32xf32>
    %c0_44 = arith.constant 0 : index
    %c0_45 = arith.constant 0 : index
    %88 = vector.load %arg15[%c0_44, %c0_45] : memref<1x32xf32, #tpu.memory_space<vmem>>, vector<1x32xf32>
    %89 = vector.broadcast %88 : vector<1x32xf32> to vector<16x32xf32>
    %90 = arith.mulf %87, %89 : vector<16x32xf32>
    %c0_46 = arith.constant 0 : index
    %c0_47 = arith.constant 0 : index
    %91 = vector.load %arg16[%c0_46, %c0_47] : memref<1x32xf32, #tpu.memory_space<vmem>>, vector<1x32xf32>
    %92 = vector.broadcast %91 : vector<1x32xf32> to vector<16x32xf32>
    %93 = arith.addf %90, %92 : vector<16x32xf32>
    %94 = vector.shape_cast %93 : vector<16x32xf32> to vector<2x8x32xf32>
    %c0_48 = arith.constant 0 : index
    %c0_49 = arith.constant 0 : index
    %c0_50 = arith.constant 0 : index
    %95 = vector.load %arg17[%c0_48, %c0_49, %c0_50] : memref<2x8x32xf32, #tpu.memory_space<vmem>>, vector<2x8x32xf32>
    tpu.vector_store %arg17[%c0_48, %c0_49, %c0_50], %94 {strides = array<i32>} : memref<2x8x32xf32, #tpu.memory_space<vmem>>, vector<2x8x32xf32>,
    return
  }
  func.func @transform_0(%arg0: i32) -> (i32, i32, i32) {
    %c0_i32 = arith.constant 0 : i32
    %c0_i32_0 = arith.constant 0 : i32
    %c0_i32_1 = arith.constant 0 : i32
    %c0_i32_2 = arith.constant 0 : i32
    return %c0_i32, %c0_i32_0, %c0_i32_1 : i32, i32, i32
  }
  func.func @transform_1(%arg0: i32) -> (i32, i32, i32) {
    %c0_i32 = arith.constant 0 : i32
    %c0_i32_0 = arith.constant 0 : i32
    %c0_i32_1 = arith.constant 0 : i32
    %c0_i32_2 = arith.constant 0 : i32
    return %c0_i32, %c0_i32_0, %c0_i32_1 : i32, i32, i32
  }
  func.func @transform_2(%arg0: i32) -> (i32, i32, i32) {
    %c0_i32 = arith.constant 0 : i32
    %c0_i32_0 = arith.constant 0 : i32
    %c0_i32_1 = arith.constant 0 : i32
    %c0_i32_2 = arith.constant 0 : i32
    return %c0_i32, %c0_i32_0, %c0_i32_1 : i32, i32, i32
  }
  func.func @transform_3(%arg0: i32) -> (i32, i32) {
    %c0_i32 = arith.constant 0 : i32
    %c0_i32_0 = arith.constant 0 : i32
    %c0_i32_1 = arith.constant 0 : i32
    return %c0_i32, %c0_i32_0 : i32, i32
  }
  func.func @transform_4(%arg0: i32) -> (i32, i32) {
    %c0_i32 = arith.constant 0 : i32
    %c0_i32_0 = arith.constant 0 : i32
    %c0_i32_1 = arith.constant 0 : i32
    return %c0_i32, %c0_i32_0 : i32, i32
  }
  func.func @transform_5(%arg0: i32) -> (i32, i32) {
    %c0_i32 = arith.constant 0 : i32
    %c0_i32_0 = arith.constant 0 : i32
    %c0_i32_1 = arith.constant 0 : i32
    return %c0_i32, %c0_i32_0 : i32, i32
  }
  func.func @transform_6(%arg0: i32) -> (i32, i32) {
    %c0_i32 = arith.constant 0 : i32
    %c0_i32_0 = arith.constant 0 : i32
    %c0_i32_1 = arith.constant 0 : i32
    return %c0_i32, %c0_i32_0 : i32, i32
  }
  func.func @transform_7(%arg0: i32) -> (i32, i32) {
    %c0_i32 = arith.constant 0 : i32
    %c0_i32_0 = arith.constant 0 : i32
    %c0_i32_1 = arith.constant 0 : i32
    return %c0_i32, %c0_i32_0 : i32, i32
  }
  func.func @transform_8(%arg0: i32) -> (i32, i32) {
    %c0_i32 = arith.constant 0 : i32
    %c0_i32_0 = arith.constant 0 : i32
    %c0_i32_1 = arith.constant 0 : i32
    return %c0_i32, %c0_i32_0 : i32, i32
  }
  func.func @transform_9(%arg0: i32) -> (i32, i32) {
    %c0_i32 = arith.constant 0 : i32
    %c0_i32_0 = arith.constant 0 : i32
    %c0_i32_1 = arith.constant 0 : i32
    return %c0_i32, %c0_i32_0 : i32, i32
  }
  func.func @transform_10(%arg0: i32) -> (i32, i32) {
    %c0_i32 = arith.constant 0 : i32
    %c0_i32_0 = arith.constant 0 : i32
    %c0_i32_1 = arith.constant 0 : i32
    return %c0_i32, %c0_i32_0 : i32, i32
  }
  func.func @transform_11(%arg0: i32) -> (i32, i32) {
    %c0_i32 = arith.constant 0 : i32
    %c0_i32_0 = arith.constant 0 : i32
    %c0_i32_1 = arith.constant 0 : i32
    return %c0_i32, %c0_i32_0 : i32, i32
  }
  func.func @transform_12(%arg0: i32) -> (i32, i32) {
    %c0_i32 = arith.constant 0 : i32
    %c0_i32_0 = arith.constant 0 : i32
    %c0_i32_1 = arith.constant 0 : i32
    return %c0_i32, %c0_i32_0 : i32, i32
  }
  func.func @transform_13(%arg0: i32) -> (i32, i32) {
    %c0_i32 = arith.constant 0 : i32
    %c0_i32_0 = arith.constant 0 : i32
    %c0_i32_1 = arith.constant 0 : i32
    return %c0_i32, %c0_i32_0 : i32, i32
  }
  func.func @transform_14(%arg0: i32) -> (i32, i32) {
    %c0_i32 = arith.constant 0 : i32
    %c0_i32_0 = arith.constant 0 : i32
    %c0_i32_1 = arith.constant 0 : i32
    return %c0_i32, %c0_i32_0 : i32, i32
  }
  func.func @transform_15(%arg0: i32) -> (i32, i32) {
    %c0_i32 = arith.constant 0 : i32
    %c0_i32_0 = arith.constant 0 : i32
    %c0_i32_1 = arith.constant 0 : i32
    return %c0_i32, %c0_i32_0 : i32, i32
  }
  func.func @transform_16(%arg0: i32) -> (i32, i32, i32) {
    %c0_i32 = arith.constant 0 : i32
    %c0_i32_0 = arith.constant 0 : i32
    %c0_i32_1 = arith.constant 0 : i32
    %c0_i32_2 = arith.constant 0 : i32
    return %c0_i32, %c0_i32_0, %c0_i32_1 : i32, i32, i32
  }
  func.func @transform_17(%arg0: i32) -> (i32, i32, i32) {
    %c0_i32 = arith.constant 0 : i32
    %c0_i32_0 = arith.constant 0 : i32
    %c0_i32_1 = arith.constant 0 : i32
    %c0_i32_2 = arith.constant 0 : i32
    return %c0_i32, %c0_i32_0, %c0_i32_1 : i32, i32, i32
  }
}

</mosaic_0001>

<llo_original>
// kernel: tile.8
$region0: #{tile.8}
  #allocation0 [shape = 's32[1]{0}', space=sflag, size = 0x4, scoped, tag = 'scoped memory for tile.8']
  %s0 = inlined_call_operand.vmem [shape: f32[8], index: 0, kind: input, shape index: {}]
  %s1 = inlined_call_operand.vmem [shape: f32[4,8], index: 1, kind: output, shape index: {}]
  // Predicated region
  $region2: #{tile.8} parent=0 // pred_check
    _
  $region3: #{tile.8} parent=0 // pred_check_branch
    %3 = sbr.rel (0) target = $region5
  $region4: #{tile.8} parent=0 // pred_region
    _
  $region5: #{tile.8} parent=0 // pred_fallthru
    _
  %v4 = vld [vmem:[%s0] ss:$0 sm:$0xff]
  %5 = vst [vmem:[%s1] sm:$0xf] %v4

// kernel: tile.9
$region0: #{tile.9}
  %s0 = inlined_call_operand.vmem [shape: f32[4,8], index: 0, kind: input, shape index: {}]
  %s1 = inlined_call_operand.vmem [shape: f32[1,32], index: 1, kind: output, shape index: {}]
  $region1: #{tile.9} parent=0
    #allocation0 [shape = 'u8[4096]{0}', space=vmem, size = 0x1000, scoped, tag = 'scoped mem for output reshape']
    #allocation1 [shape = 'u8[4096]{0}', space=vmem, size = 0x1000, scoped, tag = 'scoped mem for input reshape']
    %s3 = ssub.s32 16, 1
    %v4 = vld [vmem:[%s0] sm:%s3]
    %5 = vst [vmem:[#allocation1] sm:%s3] %v4
    %v6 = vld [vmem:[#allocation1] sm:$0x1]
    %vm7 = vcmask 64512
    %8 = vst.msk [vmem:[#allocation0] sm:$0x1] %vm7, %v6
    %s9 = scalar_lea.vmem [#allocation1], 3
    %v10 = vld [vmem:[%s9] sm:$0x1]
    %11 = vrot.lane.b32.xlu0 %v10, 24
    %v12 = vpop.permute.xlu0 %11
    %vm13 = vcmask 261312
    %14 = vst.msk [vmem:[#allocation0] sm:$0x1] %vm13, %v12
    %s15 = scalar_lea.vmem [#allocation1], 2
    %v16 = vld [vmem:[%s15] sm:$0x1]
    %17 = vrot.lane.b32.xlu0 %v16, 16
    %v18 = vpop.permute.xlu0 %17
    %vm19 = vcmask 195712
    %20 = vst.msk [vmem:[#allocation0] sm:$0x1] %vm19, %v18
    %s21 = scalar_lea.vmem [#allocation1], 1
    %v22 = vld [vmem:[%s21] sm:$0x1]
    %23 = vrot.lane.b32.xlu0 %v22, 8
    %v24 = vpop.permute.xlu0 %23
    %vm25 = vcmask 130112
    %26 = vst.msk [vmem:[#allocation0] sm:$0x1] %vm25, %v24
    %s28 = ssub.s32 2, 1
    %v29 = vld [vmem:[#allocation0] sm:%s28]
    %s31 = ssub.s32 2, 1
    %32 = vst [vmem:[%s1] sm:%s31] %v29

// kernel: multi_linear_attention.1
$region0: #{multi_linear_attention.1}
  #allocation0 [shape = 'u32[]', space=smem, size = 0x4, offset = 0x4, fixed_abs, tag = 'smem constant byte address 0x4 - core index']
  #allocation1 [shape = 'u32[72,128]{1,0:T(1,128)}', space=vmem, size = 0x9000, scoped, tag = 'internal scratch']
  %s0 = inlined_call_operand.vmem [shape: f32[2,8,32], index: 0, kind: input, shape index: {}]
  %s1 = inlined_call_operand.hbm [shape: f32[2,8,32], index: 1, kind: input, shape index: {}]
  %s2 = inlined_call_operand.vmem [shape: f32[2,8,32], index: 2, kind: input, shape index: {}]
  %s3 = inlined_call_operand.vmem [shape: f32[1,32], index: 3, kind: input, shape index: {}]
  %s4 = inlined_call_operand.vmem [shape: f32[32,32], index: 4, kind: input, shape index: {}, may-alias: {4,5}]
  %s5 = inlined_call_operand.vmem [shape: f32[32,32], index: 5, kind: input, shape index: {}, may-alias: {4,5}]
  %s6 = inlined_call_operand.vmem [shape: f32[32,32], index: 6, kind: input, shape index: {}]
  %s7 = inlined_call_operand.hbm [shape: f32[1,32], index: 7, kind: input, shape index: {}]
  %s8 = inlined_call_operand.hbm [shape: f32[32,32], index: 8, kind: input, shape index: {}]
  %s9 = inlined_call_operand.hbm [shape: f32[1,32], index: 9, kind: input, shape index: {}]
  %s10 = inlined_call_operand.hbm [shape: f32[32,32], index: 10, kind: input, shape index: {}]
  %s11 = inlined_call_operand.hbm [shape: f32[1,32], index: 11, kind: input, shape index: {}]
  %s12 = inlined_call_operand.hbm [shape: f32[32,32], index: 12, kind: input, shape index: {}]
  %s13 = inlined_call_operand.hbm [shape: f32[1,32], index: 13, kind: input, shape index: {}]
  %s14 = inlined_call_operand.hbm [shape: f32[1,32], index: 14, kind: input, shape index: {}]
  %s15 = inlined_call_operand.hbm [shape: f32[1,32], index: 15, kind: input, shape index: {}]
  %s16 = inlined_call_operand.hbm [shape: f32[2,8,32], index: 16, kind: output, shape index: {0}]
  %s17 = inlined_call_operand.vmem [shape: f32[2,8,32], index: 17, kind: output, shape index: {1}]
  %18 = xla_tuple %s16, %s17
  %s19 = sld [smem:[#allocation0]]
  $region122: #{multi_linear_attention.1} parent=0
    _
  %s21 = ssub.s32 1, %s19
  %s22 = scalar_select 0, %s21, %s19
  $region1: #{multi_linear_attention.1} parent=0
    #allocation2 [shape = 'u8[8192]{0}', space=vmem, size = 0x2000, scoped, tag = 'input window, operand 1, single buffered']
    #allocation3 [shape = 's32[1]{0}', space=sflag, size = 0x4, scoped, tag = 'scoped memory for multi_linear_attention.1']
    #allocation4 [shape = 's32[1]{0}', space=sflag, size = 0x4, scoped, tag = 'scoped memory for multi_linear_attention.1']
    #allocation5 [shape = 'u8[512]{0}', space=vmem, size = 0x400, scoped, tag = 'input window, operand 7, single buffered']
    #allocation6 [shape = 's32[1]{0}', space=sflag, size = 0x4, scoped, tag = 'scoped memory for multi_linear_attention.1']
    #allocation7 [shape = 'u8[16384]{0}', space=vmem, size = 0x4000, scoped, tag = 'input window, operand 8, single buffered']
    #allocation8 [shape = 'u8[512]{0}', space=vmem, size = 0x400, scoped, tag = 'input window, operand 9, single buffered']
    #allocation9 [shape = 's32[1]{0}', space=sflag, size = 0x4, scoped, tag = 'scoped memory for multi_linear_attention.1']
    #allocation10 [shape = 'u8[16384]{0}', space=vmem, size = 0x4000, scoped, tag = 'input window, operand 10, single buffered']
    #allocation11 [shape = 'u8[512]{0}', space=vmem, size = 0x400, scoped, tag = 'input window, operand 11, single buffered']
    #allocation12 [shape = 's32[1]{0}', space=sflag, size = 0x4, scoped, tag = 'scoped memory for multi_linear_attention.1']
    #allocation13 [shape = 'u8[16384]{0}', space=vmem, size = 0x4000, scoped, tag = 'input window, operand 12, single buffered']
    #allocation14 [shape = 'u8[512]{0}', space=vmem, size = 0x400, scoped, tag = 'input window, operand 13, single buffered']
    #allocation15 [shape = 's32[1]{0}', space=sflag, size = 0x4, scoped, tag = 'scoped memory for multi_linear_attention.1']
    #allocation16 [shape = 'u8[512]{0}', space=vmem, size = 0x400, scoped, tag = 'input window, operand 14, single buffered']
    #allocation17 [shape = 'u8[512]{0}', space=vmem, size = 0x400, scoped, tag = 'input window, operand 15, single buffered']
    #allocation18 [shape = 's32[1]{0}', space=sflag, size = 0x4, scoped, tag = 'scoped memory for multi_linear_attention.1']
    #allocation19 [shape = 'u8[8192]{0}', space=vmem, size = 0x2000, scoped, tag = 'output window, operand 0, single buffered']
    %23 = vsyncpa [#allocation3], 0
    %24 = vsyncpa [#allocation6], 0
    %25 = vsyncpa [#allocation9], 0
    %26 = vsyncpa [#allocation12], 0
    %27 = vsyncpa [#allocation15], 0
    %28 = vsyncpa [#allocation18], 0
    %29 = vsyncpa [#allocation4], 0
    // Predicated region
    $region2: #{multi_linear_attention.1} parent=1 // pred_check
      _
    $region3: #{multi_linear_attention.1} parent=1 // pred_check_branch
      %31 = sbr.rel (0) target = $region5
    $region4: #{multi_linear_attention.1} parent=1 // pred_region
      _
    $region5: #{multi_linear_attention.1} parent=1 // pred_fallthru
      _
    // Predicated region
    $region6: #{multi_linear_attention.1} parent=1 // pred_check
      _
    $region7: #{multi_linear_attention.1} parent=1 // pred_check_branch
      %33 = sbr.rel (0) target = $region9
    $region8: #{multi_linear_attention.1} parent=1 // pred_region
      %35 = vsyncadd [#allocation3], 0
      %s36 = sshll.u32 %s1, 4
      %s37 = int_to_ptr.hbm [resolvable:$true] %s36
      %s38 = sshll.u32 [#allocation2], 4
      %s39 = int_to_ptr.vmem [resolvable:$true] %s38
      %44 = dma.hbm_to_vmem [thread:$0]  %s37, 256, %s39, [#allocation3], 128, 128, 8
    $region9: #{multi_linear_attention.1} parent=1 // pred_fallthru
      _
    // Predicated region
    $region10: #{multi_linear_attention.1} parent=1 // pred_check
      _
    $region11: #{multi_linear_attention.1} parent=1 // pred_check_branch
      %46 = sbr.rel (0) target = $region13
    $region12: #{multi_linear_attention.1} parent=1 // pred_region
      _
    $region13: #{multi_linear_attention.1} parent=1 // pred_fallthru
      _
    // Predicated region
    $region14: #{multi_linear_attention.1} parent=1 // pred_check
      _
    $region15: #{multi_linear_attention.1} parent=1 // pred_check_branch
      %48 = sbr.rel (0) target = $region17
    $region16: #{multi_linear_attention.1} parent=1 // pred_region
      _
    $region17: #{multi_linear_attention.1} parent=1 // pred_fallthru
      _
    // Predicated region
    $region18: #{multi_linear_attention.1} parent=1 // pred_check
      _
    $region19: #{multi_linear_attention.1} parent=1 // pred_check_branch
      %50 = sbr.rel (0) target = $region21
    $region20: #{multi_linear_attention.1} parent=1 // pred_region
      _
    $region21: #{multi_linear_attention.1} parent=1 // pred_fallthru
      _
    // Predicated region
    $region22: #{multi_linear_attention.1} parent=1 // pred_check
      _
    $region23: #{multi_linear_attention.1} parent=1 // pred_check_branch
      %52 = sbr.rel (0) target = $region25
    $region24: #{multi_linear_attention.1} parent=1 // pred_region
      _
    $region25: #{multi_linear_attention.1} parent=1 // pred_fallthru
      _
    // Predicated region
    $region26: #{multi_linear_attention.1} parent=1 // pred_check
      _
    $region27: #{multi_linear_attention.1} parent=1 // pred_check_branch
      %54 = sbr.rel (0) target = $region29
    $region28: #{multi_linear_attention.1} parent=1 // pred_region
      _
    $region29: #{multi_linear_attention.1} parent=1 // pred_fallthru
      _
    // Predicated region
    $region30: #{multi_linear_attention.1} parent=1 // pred_check
      _
    $region31: #{multi_linear_attention.1} parent=1 // pred_check_branch
      %56 = sbr.rel (0) target = $region33
    $region32: #{multi_linear_attention.1} parent=1 // pred_region
      %58 = vsyncadd [#allocation6], 0
      %s60 = sshll.u32 %s7, 4
      %s61 = int_to_ptr.hbm [resolvable:$true] %s60
      %s62 = sshll.u32 [#allocation5], 4
      %s63 = int_to_ptr.vmem [resolvable:$true] %s62
      %65 = dma.hbm_to_vmem [thread:$0]  %s61, 16, %s63, [#allocation6]
    $region33: #{multi_linear_attention.1} parent=1 // pred_fallthru
      _
    // Predicated region
    $region34: #{multi_linear_attention.1} parent=1 // pred_check
      _
    $region35: #{multi_linear_attention.1} parent=1 // pred_check_branch
      %67 = sbr.rel (0) target = $region37
    $region36: #{multi_linear_attention.1} parent=1 // pred_region
      %69 = vsyncadd [#allocation6], 0
      %s70 = sshll.u32 %s8, 4
      %s71 = int_to_ptr.hbm [resolvable:$true] %s70
      %s72 = sshll.u32 [#allocation7], 4
      %s73 = int_to_ptr.vmem [resolvable:$true] %s72
      %78 = dma.hbm_to_vmem [thread:$0]  %s71, 512, %s73, [#allocation6], 128, 128, 8
    $region37: #{multi_linear_attention.1} parent=1 // pred_fallthru
      _
    // Predicated region
    $region38: #{multi_linear_attention.1} parent=1 // pred_check
      _
    $region39: #{multi_linear_attention.1} parent=1 // pred_check_branch
      %80 = sbr.rel (0) target = $region41
    $region40: #{multi_linear_attention.1} parent=1 // pred_region
      %82 = vsyncadd [#allocation9], 0
      %s84 = sshll.u32 %s9, 4
      %s85 = int_to_ptr.hbm [resolvable:$true] %s84
      %s86 = sshll.u32 [#allocation8], 4
      %s87 = int_to_ptr.vmem [resolvable:$true] %s86
      %89 = dma.hbm_to_vmem [thread:$0]  %s85, 16, %s87, [#allocation9]
    $region41: #{multi_linear_attention.1} parent=1 // pred_fallthru
      _
    // Predicated region
    $region42: #{multi_linear_attention.1} parent=1 // pred_check
      _
    $region43: #{multi_linear_attention.1} parent=1 // pred_check_branch
      %91 = sbr.rel (0) target = $region45
    $region44: #{multi_linear_attention.1} parent=1 // pred_region
      %93 = vsyncadd [#allocation9], 0
      %s94 = sshll.u32 %s10, 4
      %s95 = int_to_ptr.hbm [resolvable:$true] %s94
      %s96 = sshll.u32 [#allocation10], 4
      %s97 = int_to_ptr.vmem [resolvable:$true] %s96
      %102 = dma.hbm_to_vmem [thread:$0]  %s95, 512, %s97, [#allocation9], 128, 128, 8
    $region45: #{multi_linear_attention.1} parent=1 // pred_fallthru
      _
    // Predicated region
    $region46: #{multi_linear_attention.1} parent=1 // pred_check
      _
    $region47: #{multi_linear_attention.1} parent=1 // pred_check_branch
      %104 = sbr.rel (0) target = $region49
    $region48: #{multi_linear_attention.1} parent=1 // pred_region
      %106 = vsyncadd [#allocation12], 0
      %s108 = sshll.u32 %s11, 4
      %s109 = int_to_ptr.hbm [resolvable:$true] %s108
      %s110 = sshll.u32 [#allocation11], 4
      %s111 = int_to_ptr.vmem [resolvable:$true] %s110
      %113 = dma.hbm_to_vmem [thread:$0]  %s109, 16, %s111, [#allocation12]
    $region49: #{multi_linear_attention.1} parent=1 // pred_fallthru
      _
    // Predicated region
    $region50: #{multi_linear_attention.1} parent=1 // pred_check
      _
    $region51: #{multi_linear_attention.1} parent=1 // pred_check_branch
      %115 = sbr.rel (0) target = $region53
    $region52: #{multi_linear_attention.1} parent=1 // pred_region
      %117 = vsyncadd [#allocation12], 0
      %s118 = sshll.u32 %s12, 4
      %s119 = int_to_ptr.hbm [resolvable:$true] %s118
      %s120 = sshll.u32 [#allocation13], 4
      %s121 = int_to_ptr.vmem [resolvable:$true] %s120
      %126 = dma.hbm_to_vmem [thread:$0]  %s119, 512, %s121, [#allocation12], 128, 128, 8
    $region53: #{multi_linear_attention.1} parent=1 // pred_fallthru
      _
    // Predicated region
    $region54: #{multi_linear_attention.1} parent=1 // pred_check
      _
    $region55: #{multi_linear_attention.1} parent=1 // pred_check_branch
      %128 = sbr.rel (0) target = $region57
    $region56: #{multi_linear_attention.1} parent=1 // pred_region
      %130 = vsyncadd [#allocation15], 0
      %s132 = sshll.u32 %s13, 4
      %s133 = int_to_ptr.hbm [resolvable:$true] %s132
      %s134 = sshll.u32 [#allocation14], 4
      %s135 = int_to_ptr.vmem [resolvable:$true] %s134
      %137 = dma.hbm_to_vmem [thread:$0]  %s133, 16, %s135, [#allocation15]
    $region57: #{multi_linear_attention.1} parent=1 // pred_fallthru
      _
    // Predicated region
    $region58: #{multi_linear_attention.1} parent=1 // pred_check
      _
    $region59: #{multi_linear_attention.1} parent=1 // pred_check_branch
      %139 = sbr.rel (0) target = $region61
    $region60: #{multi_linear_attention.1} parent=1 // pred_region
      %141 = vsyncadd [#allocation15], 0
      %s143 = sshll.u32 %s14, 4
      %s144 = int_to_ptr.hbm [resolvable:$true] %s143
      %s145 = sshll.u32 [#allocation16], 4
      %s146 = int_to_ptr.vmem [resolvable:$true] %s145
      %148 = dma.hbm_to_vmem [thread:$0]  %s144, 16, %s146, [#allocation15]
    $region61: #{multi_linear_attention.1} parent=1 // pred_fallthru
      _
    // Predicated region
    $region62: #{multi_linear_attention.1} parent=1 // pred_check
      _
    $region63: #{multi_linear_attention.1} parent=1 // pred_check_branch
      %150 = sbr.rel (0) target = $region65
    $region64: #{multi_linear_attention.1} parent=1 // pred_region
      %152 = vsyncadd [#allocation18], 0
      %s154 = sshll.u32 %s15, 4
      %s155 = int_to_ptr.hbm [resolvable:$true] %s154
      %s156 = sshll.u32 [#allocation17], 4
      %s157 = int_to_ptr.vmem [resolvable:$true] %s156
      %159 = dma.hbm_to_vmem [thread:$0]  %s155, 16, %s157, [#allocation18]
    $region65: #{multi_linear_attention.1} parent=1 // pred_fallthru
      _
    // Predicated region
    $region66: #{multi_linear_attention.1} parent=1 // pred_check
      _
    $region67: #{multi_linear_attention.1} parent=1 // pred_check_branch
      %161 = sbr.rel (0) target = $region69
    $region68: #{multi_linear_attention.1} parent=1 // pred_region
      %163 = dma.done [#allocation3], 256
    $region69: #{multi_linear_attention.1} parent=1 // pred_fallthru
      _
    // Predicated region
    $region70: #{multi_linear_attention.1} parent=1 // pred_check
      _
    $region71: #{multi_linear_attention.1} parent=1 // pred_check_branch
      %165 = sbr.rel (0) target = $region73
    $region72: #{multi_linear_attention.1} parent=1 // pred_region
      %167 = dma.done [#allocation6], 16
    $region73: #{multi_linear_attention.1} parent=1 // pred_fallthru
      _
    // Predicated region
    $region74: #{multi_linear_attention.1} parent=1 // pred_check
      _
    $region75: #{multi_linear_attention.1} parent=1 // pred_check_branch
      %169 = sbr.rel (0) target = $region77
    $region76: #{multi_linear_attention.1} parent=1 // pred_region
      %171 = dma.done [#allocation6], 512
    $region77: #{multi_linear_attention.1} parent=1 // pred_fallthru
      _
    // Predicated region
    $region78: #{multi_linear_attention.1} parent=1 // pred_check
      _
    $region79: #{multi_linear_attention.1} parent=1 // pred_check_branch
      %173 = sbr.rel (0) target = $region81
    $region80: #{multi_linear_attention.1} parent=1 // pred_region
      %175 = dma.done [#allocation9], 16
    $region81: #{multi_linear_attention.1} parent=1 // pred_fallthru
      _
    // Predicated region
    $region82: #{multi_linear_attention.1} parent=1 // pred_check
      _
    $region83: #{multi_linear_attention.1} parent=1 // pred_check_branch
      %177 = sbr.rel (0) target = $region85
    $region84: #{multi_linear_attention.1} parent=1 // pred_region
      %179 = dma.done [#allocation9], 512
    $region85: #{multi_linear_attention.1} parent=1 // pred_fallthru
      _
    // Predicated region
    $region86: #{multi_linear_attention.1} parent=1 // pred_check
      _
    $region87: #{multi_linear_attention.1} parent=1 // pred_check_branch
      %181 = sbr.rel (0) target = $region89
    $region88: #{multi_linear_attention.1} parent=1 // pred_region
      %183 = dma.done [#allocation12], 16
    $region89: #{multi_linear_attention.1} parent=1 // pred_fallthru
      _
    // Predicated region
    $region90: #{multi_linear_attention.1} parent=1 // pred_check
      _
    $region91: #{multi_linear_attention.1} parent=1 // pred_check_branch
      %185 = sbr.rel (0) target = $region93
    $region92: #{multi_linear_attention.1} parent=1 // pred_region
      %187 = dma.done [#allocation12], 512
    $region93: #{multi_linear_attention.1} parent=1 // pred_fallthru
      _
    // Predicated region
    $region94: #{multi_linear_attention.1} parent=1 // pred_check
      _
    $region95: #{multi_linear_attention.1} parent=1 // pred_check_branch
      %189 = sbr.rel (0) target = $region97
    $region96: #{multi_linear_attention.1} parent=1 // pred_region
      %191 = dma.done [#allocation15], 16
    $region97: #{multi_linear_attention.1} parent=1 // pred_fallthru
      _
    // Predicated region
    $region98: #{multi_linear_attention.1} parent=1 // pred_check
      _
    $region99: #{multi_linear_attention.1} parent=1 // pred_check_branch
      %193 = sbr.rel (0) target = $region101
    $region100: #{multi_linear_attention.1} parent=1 // pred_region
      %195 = dma.done [#allocation15], 16
    $region101: #{multi_linear_attention.1} parent=1 // pred_fallthru
      _
    // Predicated region
    $region102: #{multi_linear_attention.1} parent=1 // pred_check
      _
    $region103: #{multi_linear_attention.1} parent=1 // pred_check_branch
      %197 = sbr.rel (0) target = $region105
    $region104: #{multi_linear_attention.1} parent=1 // pred_region
      %199 = dma.done [#allocation18], 16
    $region105: #{multi_linear_attention.1} parent=1 // pred_fallthru
      _
    %v201 = vld [vmem:[%s0] sm:$0xff]
    %v202 = vld [vmem:[%s0 + $0x8] sm:$0xff]
    %v203 = vld [vmem:[#allocation2] sm:$0xff]
    %v204 = vld [vmem:[#allocation2 + $0x8] sm:$0xff]
    %v205 = vld [vmem:[%s2] sm:$0xff]
    %v206 = vld [vmem:[%s2 + $0x8] sm:$0xff]
    %v207 = vld [vmem:[%s6] sm:$0xff]
    %v208 = vld [vmem:[%s6 + $0x8] sm:$0xff]
    %v209 = vld [vmem:[%s6 + $0x10] sm:$0xff]
    %v210 = vld [vmem:[%s6 + $0x18] sm:$0xff]
    %v211 = vpack.c.bf16 %v202, %v201
    %v212 = vpack.c.bf16 %v208, %v207
    %v213 = vpack.c.bf16 %v210, %v209
    %v214 = vld [vmem:[#allocation5] sm:$0x1]
    %v216 = vperm.slane %v214, 0
    %vm218 = vcmask 261120
    %v220 = vsel %vm218, %v211, 0
    %222 = vmatpush.bf16.msra.mxu0 0
    %223 = vmatpush.bf16.msra.mxu0 0
    %224 = vmatpush.bf16.msra.mxu0 0
    %225 = vmatpush.bf16.msra.mxu0 0
    %226 = vmatpush.bf16.msra.mxu0 0
    %227 = vmatpush.bf16.msra.mxu0 0
    %228 = vmatpush.bf16.msra.mxu0 %v213
    %229 = vmatpush.bf16.msra.mxu0 %v212
    %230 = vmatmul.bf16.gmra.mxu0 %v220
    %v231 = vpop.f32.mrf.mxu0
    %v232 = vadd.f32 %v216, %v231
    %v233 = vpop.f32.mrf.mxu0
    %v234 = vadd.f32 %v216, %v233
    %235 = vdwg.mxu0
    %v236 = vld [vmem:[#allocation7] sm:$0xff]
    %v237 = vld [vmem:[#allocation7 + $0x8] sm:$0xff]
    %v238 = vld [vmem:[#allocation7 + $0x10] sm:$0xff]
    %v239 = vld [vmem:[#allocation7 + $0x18] sm:$0xff]
    %v240 = vpack.c.bf16 %v204, %v203
    %v241 = vpack.c.bf16 %v237, %v236
    %v242 = vpack.c.bf16 %v239, %v238
    %v243 = vld [vmem:[#allocation8] sm:$0x1]
    %v245 = vperm.slane %v243, 0
    %v248 = vsel %vm218, %v240, 0
    %250 = vmatpush.bf16.msra.mxu0 0
    %251 = vmatpush.bf16.msra.mxu0 0
    %252 = vmatpush.bf16.msra.mxu0 0
    %253 = vmatpush.bf16.msra.mxu0 0
    %254 = vmatpush.bf16.msra.mxu0 0
    %255 = vmatpush.bf16.msra.mxu0 0
    %256 = vmatpush.bf16.msra.mxu0 %v242
    %257 = vmatpush.bf16.msra.mxu0 %v241
    %258 = vmatmul.bf16.gmra.mxu0 %v248
    %v259 = vpop.f32.mrf.mxu0
    %v260 = vadd.f32 %v245, %v259
    %v261 = vpop.f32.mrf.mxu0
    %v262 = vadd.f32 %v245, %v261
    %263 = vdwg.mxu0
    %v264 = vld [vmem:[#allocation10] sm:$0xff]
    %v265 = vld [vmem:[#allocation10 + $0x8] sm:$0xff]
    %v266 = vld [vmem:[#allocation10 + $0x10] sm:$0xff]
    %v267 = vld [vmem:[#allocation10 + $0x18] sm:$0xff]
    %v268 = vpack.c.bf16 %v206, %v205
    %v269 = vpack.c.bf16 %v265, %v264
    %v270 = vpack.c.bf16 %v267, %v266
    %v271 = vld [vmem:[#allocation11] sm:$0x1]
    %v273 = vperm.slane %v271, 0
    %v276 = vsel %vm218, %v268, 0
    %278 = vmatpush.bf16.msra.mxu0 0
    %279 = vmatpush.bf16.msra.mxu0 0
    %280 = vmatpush.bf16.msra.mxu0 0
    %281 = vmatpush.bf16.msra.mxu0 0
    %282 = vmatpush.bf16.msra.mxu0 0
    %283 = vmatpush.bf16.msra.mxu0 0
    %284 = vmatpush.bf16.msra.mxu0 %v270
    %285 = vmatpush.bf16.msra.mxu0 %v269
    %286 = vmatmul.bf16.gmra.mxu0 %v276
    %v287 = vpop.f32.mrf.mxu0
    %v288 = vadd.f32 %v273, %v287
    %v289 = vpop.f32.mrf.mxu0
    %v290 = vadd.f32 %v273, %v289
    %291 = vdwg.mxu0
    %v292 = vsel %vm218, %v260, 0.0
    %v293 = vrot.slane %v292, 4
    %v294 = vadd.f32 %v292, %v293
    %v295 = vrot.slane %v294, 2
    %v296 = vadd.f32 %v294, %v295
    %v297 = vrot.slane %v296, 1
    %v298 = vadd.f32 %v296, %v297
    %v299 = vsel %vm218, %v262, 0.0
    %v300 = vrot.slane %v299, 4
    %v301 = vadd.f32 %v299, %v300
    %v302 = vrot.slane %v301, 2
    %v303 = vadd.f32 %v301, %v302
    %v304 = vrot.slane %v303, 1
    %v305 = vadd.f32 %v303, %v304
    %v306 = vld [vmem:[%s3] sm:$0x1]
    %v307 = vmul.f32 %v298, %v306
    %v308 = vmul.f32 %v305, %v306
    %v309 = vperm.slane %v307, 0
    %v310 = vperm.slane %v308, 0
    %v311 = vmul.f32 %v232, %v309
    %v312 = vmul.f32 %v234, %v310
    %v313 = vld [vmem:[%s4] sm:$0xff]
    %v314 = vld [vmem:[%s4 + $0x8] sm:$0xff]
    %v315 = vld [vmem:[%s4 + $0x10] sm:$0xff]
    %v316 = vld [vmem:[%s4 + $0x18] sm:$0xff]
    %v317 = vmul.f32 %v288, %v313
    %v318 = vmul.f32 %v288, %v314
    %v319 = vmul.f32 %v288, %v315
    %v320 = vmul.f32 %v288, %v316
    %v321 = vmul.f32 %v290, %v313
    %v322 = vmul.f32 %v290, %v314
    %v323 = vmul.f32 %v290, %v315
    %v324 = vmul.f32 %v290, %v316
    %v325 = vpack.c.bf16 %v311, %v311
    %v326 = vpack.c.bf16 %v312, %v312
    %v327 = vpack.c.bf16 %v317, %v317
    %v328 = vpack.c.bf16 %v318, %v318
    %v329 = vpack.c.bf16 %v319, %v319
    %v330 = vpack.c.bf16 %v320, %v320
    %v331 = vpack.c.bf16 %v321, %v321
    %v332 = vpack.c.bf16 %v322, %v322
    %v333 = vpack.c.bf16 %v323, %v323
    %v334 = vpack.c.bf16 %v324, %v324
    %v339 = vunpack.c.l.b16 %v327
    %v340 = vunpack.c.l.b16 %v328
    %v341 = vunpack.c.l.b16 %v329
    %v342 = vunpack.c.l.b16 %v330
    %v343 = vpack.c.b16 %v340, %v339
    %v344 = vpack.c.b16 %v342, %v341
    %v348 = vsel %vm218, %v325, 0
    %350 = vmatpush.bf16.msra.mxu0 0
    %351 = vmatpush.bf16.msra.mxu0 0
    %352 = vmatpush.bf16.msra.mxu0 0
    %353 = vmatpush.bf16.msra.mxu0 0
    %354 = vmatpush.bf16.msra.mxu0 0
    %355 = vmatpush.bf16.msra.mxu0 0
    %356 = vmatpush.bf16.msra.mxu0 %v344
    %357 = vmatpush.bf16.msra.mxu0 %v343
    %358 = vmatmul.bf16.gmra.mxu0 %v348
    %v359 = vpop.f32.mrf.mxu0
    %v360 = vadd.f32 0.0, %v359
    %v361 = vpop.f32.mrf.mxu0
    %362 = vdwg.mxu0
    %v367 = vunpack.c.l.b16 %v331
    %v368 = vunpack.c.l.b16 %v332
    %v369 = vunpack.c.l.b16 %v333
    %v370 = vunpack.c.l.b16 %v334
    %v371 = vpack.c.b16 %v368, %v367
    %v372 = vpack.c.b16 %v370, %v369
    %v376 = vsel %vm218, %v326, 0
    %378 = vmatpush.bf16.msra.mxu0 0
    %379 = vmatpush.bf16.msra.mxu0 0
    %380 = vmatpush.bf16.msra.mxu0 0
    %381 = vmatpush.bf16.msra.mxu0 0
    %382 = vmatpush.bf16.msra.mxu0 0
    %383 = vmatpush.bf16.msra.mxu0 0
    %384 = vmatpush.bf16.msra.mxu0 %v372
    %385 = vmatpush.bf16.msra.mxu0 %v371
    %386 = vmatmul.bf16.gmra.mxu0 %v376
    %v387 = vpop.f32.mrf.mxu0
    %v388 = vadd.f32 0.0, %v387
    %v389 = vpop.f32.mrf.mxu0
    %390 = vdwg.mxu0
    %v391 = vld [vmem:[%s5] sm:$0xff]
    %v392 = vld [vmem:[%s5 + $0x8] sm:$0xff]
    %v393 = vld [vmem:[%s5 + $0x10] sm:$0xff]
    %v394 = vld [vmem:[%s5 + $0x18] sm:$0xff]
    %v395 = vmul.f32 %v260, %v391
    %v396 = vmul.f32 %v260, %v392
    %v397 = vmul.f32 %v260, %v393
    %v398 = vmul.f32 %v260, %v394
    %v399 = vmul.f32 %v262, %v391
    %v400 = vmul.f32 %v262, %v392
    %v401 = vmul.f32 %v262, %v393
    %v402 = vmul.f32 %v262, %v394
    %v403 = vpack.c.bf16 %v232, %v232
    %v404 = vpack.c.bf16 %v234, %v234
    %v405 = vpack.c.bf16 %v395, %v395
    %v406 = vpack.c.bf16 %v396, %v396
    %v407 = vpack.c.bf16 %v397, %v397
    %v408 = vpack.c.bf16 %v398, %v398
    %v409 = vpack.c.bf16 %v399, %v399
    %v410 = vpack.c.bf16 %v400, %v400
    %v411 = vpack.c.bf16 %v401, %v401
    %v412 = vpack.c.bf16 %v402, %v402
    %v417 = vunpack.c.l.b16 %v405
    %v418 = vunpack.c.l.b16 %v406
    %v419 = vunpack.c.l.b16 %v407
    %v420 = vunpack.c.l.b16 %v408
    %v421 = vpack.c.b16 %v418, %v417
    %v422 = vpack.c.b16 %v420, %v419
    %v424 = vsel %vm218, %v403, 0
    %v427 = vsel %vm218, %v421, 0
    %v430 = vsel %vm218, %v422, 0
    %432 = vmatpush.bf16.xpose.msra.mxu0 0
    %433 = vmatpush.bf16.xpose.msra.mxu0 0
    %434 = vmatpush.bf16.xpose.msra.mxu0 0
    %435 = vmatpush.bf16.xpose.msra.mxu0 0
    %436 = vmatpush.bf16.xpose.msra.mxu0 0
    %437 = vmatpush.bf16.xpose.msra.mxu0 0
    %438 = vmatpush.bf16.xpose.msra.mxu0 %v430
    %439 = vmatpush.bf16.xpose.msra.mxu0 %v427
    %440 = vmatmul.bf16.gmra.mxu0 %v424
    %v441 = vpop.f32.mrf.mxu0
    %v442 = vadd.f32 0.0, %v441
    %v443 = vpop.f32.mrf.mxu0
    %444 = vdwg.mxu0
    %v449 = vunpack.c.l.b16 %v409
    %v450 = vunpack.c.l.b16 %v410
    %v451 = vunpack.c.l.b16 %v411
    %v452 = vunpack.c.l.b16 %v412
    %v453 = vpack.c.b16 %v450, %v449
    %v454 = vpack.c.b16 %v452, %v451
    %v456 = vsel %vm218, %v404, 0
    %v459 = vsel %vm218, %v453, 0
    %v462 = vsel %vm218, %v454, 0
    %464 = vmatpush.bf16.xpose.msra.mxu0 0
    %465 = vmatpush.bf16.xpose.msra.mxu0 0
    %466 = vmatpush.bf16.xpose.msra.mxu0 0
    %467 = vmatpush.bf16.xpose.msra.mxu0 0
    %468 = vmatpush.bf16.xpose.msra.mxu0 0
    %469 = vmatpush.bf16.xpose.msra.mxu0 0
    %470 = vmatpush.bf16.xpose.msra.mxu0 %v462
    %471 = vmatpush.bf16.xpose.msra.mxu0 %v459
    %472 = vmatmul.bf16.gmra.mxu0 %v456
    %v473 = vpop.f32.mrf.mxu0
    %v474 = vadd.f32 0.0, %v473
    %v475 = vpop.f32.mrf.mxu0
    %476 = vdwg.mxu0
    %477 = vst.msk [vmem:[%s17] sm:$0xff] %vm218, %v442
    %478 = vst.msk [vmem:[%s17 + $0x8] sm:$0xff] %vm218, %v474
    %v479 = vld [vmem:[#allocation13] sm:$0xff]
    %v480 = vld [vmem:[#allocation13 + $0x8] sm:$0xff]
    %v481 = vld [vmem:[#allocation13 + $0x10] sm:$0xff]
    %v482 = vld [vmem:[#allocation13 + $0x18] sm:$0xff]
    %v483 = vpack.c.bf16 %v388, %v360
    %v484 = vpack.c.bf16 %v480, %v479
    %v485 = vpack.c.bf16 %v482, %v481
    %v486 = vld [vmem:[#allocation14] sm:$0x1]
    %v488 = vperm.slane %v486, 0
    %v491 = vsel %vm218, %v483, 0
    %493 = vmatpush.bf16.msra.mxu0 0
    %494 = vmatpush.bf16.msra.mxu0 0
    %495 = vmatpush.bf16.msra.mxu0 0
    %496 = vmatpush.bf16.msra.mxu0 0
    %497 = vmatpush.bf16.msra.mxu0 0
    %498 = vmatpush.bf16.msra.mxu0 0
    %499 = vmatpush.bf16.msra.mxu0 %v485
    %500 = vmatpush.bf16.msra.mxu0 %v484
    %501 = vmatmul.bf16.gmra.mxu0 %v491
    %v502 = vpop.f32.mrf.mxu0
    %v503 = vadd.f32 %v488, %v502
    %v504 = vpop.f32.mrf.mxu0
    %v505 = vadd.f32 %v488, %v504
    %506 = vdwg.mxu0
    %v507 = vadd.f32 %v503, %v201
    %v508 = vadd.f32 %v505, %v202
    %v509 = vsel %vm218, %v507, 0.0
    %510 = vadd.xlane.f32.xlu0 %v509
    %v511 = vpop.xlane.xlu0 %510
    %v512 = vsel %vm218, %v508, 0.0
    %513 = vadd.xlane.f32.xlu0 %v512
    %v514 = vpop.xlane.xlu0 %513
    %v515 = vmul.f32 %v511, 0.03125
    %v516 = vmul.f32 %v514, 0.03125
    %v517 = vmul.f32 %v507, %v507
    %v518 = vmul.f32 %v508, %v508
    %v519 = vsel %vm218, %v517, 0.0
    %520 = vadd.xlane.f32.xlu0 %v519
    %v521 = vpop.xlane.xlu0 %520
    %v522 = vsel %vm218, %v518, 0.0
    %523 = vadd.xlane.f32.xlu0 %v522
    %v524 = vpop.xlane.xlu0 %523
    %v525 = vmul.f32 %v521, 0.03125
    %v526 = vmul.f32 %v524, 0.03125
    %v527 = vmul.f32 %v515, %v515
    %v528 = vmul.f32 %v516, %v516
    %v529 = vsub.f32 %v525, %v527
    %v530 = vsub.f32 %v526, %v528
    %v531 = vsub.f32 %v507, %v515
    %v532 = vsub.f32 %v508, %v516
    %v533 = vadd.f32 %v529, 1e-05
    %v534 = vadd.f32 %v530, 1e-05
    %v535 = vrsqrt.pop %v533
    %v536 = vmul.f32 %v535, %v533
    %v537 = vmul.f32 %v536, %v535
    %v538 = vmul.f32 0.5, %v537
    %v539 = vsub.f32 1.5, %v538
    %v540 = vmul.f32 %v535, %v539
    %vm541 = vweird.f32 %v533
    %vm542 = vweird.f32 %v535
    %vm543 = vmor %vm541, %vm542
    %v544 = vsel %vm543, %v535, %v540
    %v545 = vrsqrt.pop %v534
    %v546 = vmul.f32 %v545, %v534
    %v547 = vmul.f32 %v546, %v545
    %v548 = vmul.f32 0.5, %v547
    %v549 = vsub.f32 1.5, %v548
    %v550 = vmul.f32 %v545, %v549
    %vm551 = vweird.f32 %v534
    %vm552 = vweird.f32 %v545
    %vm553 = vmor %vm551, %vm552
    %v554 = vsel %vm553, %v545, %v550
    %v555 = vmul.f32 %v531, %v544
    %v556 = vmul.f32 %v532, %v554
    %v557 = vld [vmem:[#allocation16] sm:$0x1]
    %v559 = vperm.slane %v557, 0
    %v561 = vmul.f32 %v555, %v559
    %v562 = vmul.f32 %v556, %v559
    %v563 = vld [vmem:[#allocation17] sm:$0x1]
    %v565 = vperm.slane %v563, 0
    %v567 = vadd.f32 %v561, %v565
    %v568 = vadd.f32 %v562, %v565
    %569 = vst.msk [vmem:[#allocation19] sm:$0xff] %vm218, %v567
    %570 = vst.msk [vmem:[#allocation19 + $0x8] sm:$0xff] %vm218, %v568
    // Predicated region
    $region106: #{multi_linear_attention.1} parent=1 // pred_check
      _
    $region107: #{multi_linear_attention.1} parent=1 // pred_check_branch
      %572 = sbr.rel (0) target = $region109
    $region108: #{multi_linear_attention.1} parent=1 // pred_region
      %574 = vsyncadd [#allocation4], 0
      %s575 = sshll.u32 [#allocation19], 4
      %s576 = int_to_ptr.vmem [resolvable:$true] %s575
      %s577 = sshll.u32 %s16, 4
      %s578 = int_to_ptr.hbm [resolvable:$true] %s577
      %583 = dma.vmem_to_hbm [thread:$0]  %s576, 256, %s578, [#allocation4], 128, 128, 8
    $region109: #{multi_linear_attention.1} parent=1 // pred_fallthru
      _
    // Predicated region
    $region110: #{multi_linear_attention.1} parent=1 // pred_check
      _
    $region111: #{multi_linear_attention.1} parent=1 // pred_check_branch
      %585 = sbr.rel (0) target = $region113
    $region112: #{multi_linear_attention.1} parent=1 // pred_region
      _
    $region113: #{multi_linear_attention.1} parent=1 // pred_fallthru
      _
    // Predicated region
    $region114: #{multi_linear_attention.1} parent=1 // pred_check
      _
    $region115: #{multi_linear_attention.1} parent=1 // pred_check_branch
      %587 = sbr.rel (0) target = $region117
    $region116: #{multi_linear_attention.1} parent=1 // pred_region
      %589 = dma.done [#allocation4], 256
    $region117: #{multi_linear_attention.1} parent=1 // pred_fallthru
      _
    // Predicated region
    $region118: #{multi_linear_attention.1} parent=1 // pred_check
      _
    $region119: #{multi_linear_attention.1} parent=1 // pred_check_branch
      %591 = sbr.rel (0) target = $region121
    $region120: #{multi_linear_attention.1} parent=1 // pred_region
      _
    $region121: #{multi_linear_attention.1} parent=1 // pred_fallthru
      _
    %592 = vsyncpa [#allocation3], 1
    %593 = vsyncpa [#allocation6], 1
    %594 = vsyncpa [#allocation9], 1
    %595 = vsyncpa [#allocation12], 1
    %596 = vsyncpa [#allocation15], 1
    %597 = vsyncpa [#allocation18], 1
    %598 = vsyncpa [#allocation4], 1

</llo_original>
